<compile_context>
chip_gen: v5e
topology: v5e:2x2
jax: 0.10.0
libtpu: 0.0.40
codegen_flags: <defaults>
</compile_context>

<pallas_src>
import math
import functools

import jax
import jax.numpy as jnp
from jax import lax
from jax.experimental import pallas as pl
from jax.experimental.pallas import tpu as pltpu


def _round_up(x, m):
    return ((x + m - 1) // m) * m


def _cdiv(a, b):
    return (a + b - 1) // b


def _gelu(x, approximate=False):
    if approximate:
        # tanh approximation (EUP-friendly); changes numerics vs PyTorch default.
        return jax.nn.gelu(x, approximate=True)
    # PyTorch nn.GELU() default (approximate='none'): 0.5*x*(1+erf(x/sqrt(2)))
    return 0.5 * x * (1.0 + lax.erf(x * (1.0 / math.sqrt(2.0))))


def _ffb_kernel(x_ref, w1_ref, b1_ref, w2_ref, b2_ref, o_ref, *,
                chunk_px, approximate_gelu):
    # x_ref:  (C_in, TPX)       w1_ref: (C_mid, C_in)   b1_ref: (C_mid, 1) f32
    # w2_ref: (C_out, C_mid)    b2_ref: (C_out, 1) f32  o_ref:  (C_out, TPX)
    w1 = w1_ref[...]
    w2 = w2_ref[...]
    b1 = b1_ref[...]
    b2 = b2_ref[...]

    def compute(x):
        # Cast activations to the MXU operand dtype in-kernel (no HBM pass).
        # Accumulation, bias add and GELU stay in f32.
        xm = x.astype(w1.dtype)
        h = jnp.dot(w1, xm, preferred_element_type=jnp.float32) + b1
        h = _gelu(h, approximate=approximate_gelu)
        y = jnp.dot(w2, h.astype(w2.dtype), preferred_element_type=jnp.float32) + b2
        return y.astype(o_ref.dtype)

    tile_px = x_ref.shape[-1]
    if tile_px <= chunk_px:
        o_ref[...] = compute(x_ref[...])
    else:
        # Chunk the compute to <= chunk_px lanes so the (C_mid, chunk) f32
        # intermediate stays register-resident; DMA block stays at tile_px.
        n_chunks = tile_px // chunk_px  # tile_px is a multiple of chunk_px

        def body(c, carry):
            start = pl.multiple_of(c * chunk_px, 128)
            o_ref[:, pl.ds(start, chunk_px)] = compute(
                x_ref[:, pl.ds(start, chunk_px)])
            return carry

        lax.fori_loop(0, n_chunks, body, 0, unroll=True)


def _pick_tile_px(hw, n_batch, max_tile_px):
    """Lane-dense pixel tile: multiple of 128, <= max_tile_px, <= ceil128(HW)."""
    hw128 = _round_up(hw, 128)
    t = min(_round_up(max_tile_px, 128), hw128)
    if n_batch == 1 and hw128 > 128:
        # v7x has 2 TensorCores; with a single batch element keep >= 2 pixel
        # blocks so both cores get work (harmless on 1-TC v5e/v6e).
        t = min(t, _round_up(_cdiv(hw128, 2), 128))
    return max(t, 128)


def _pick_chunk_px(tile_px):
    """Largest of (512, 256, 128) that divides tile_px (tile_px % 128 == 0)."""
    for c in (512, 256, 128):
        if tile_px % c == 0:
            return min(c, tile_px)
    return tile_px


def feed_forward_block(x_nchw, w1, b1, w2, b2, *,
                       max_tile_px=1024,
                       use_bf16_matmul=True,
                       approximate_gelu=False,
                       out_dtype=None):
    """x_nchw: (N, C_in, H, W).
    w1: (C_mid, C_in), b1: (C_mid,), w2: (C_out, C_mid), b2: (C_out,)
    (PyTorch Conv2d 1x1 weight layout with the trailing (1,1) squeezed).

    use_bf16_matmul=True (default): bf16 MXU operands, f32 accumulation/bias/
    GELU (small precision loss vs PyTorch).  use_bf16_matmul=False reproduces
    exact f32 numerics."""
    N, C_in, H, W = x_nchw.shape
    C_mid = w1.shape[0]
    C_out = w2.shape[0]
    HW = H * W
    out_dtype = x_nchw.dtype if out_dtype is None else out_dtype

    # NCHW -> (N, C_in, H*W): contiguous reshape, no HBM pass.
    x_pix = x_nchw.reshape(N, C_in, HW)

    tile_px = _pick_tile_px(HW, N, max_tile_px)
    chunk_px = _pick_chunk_px(tile_px)
    grid = (N, _cdiv(HW, tile_px))  # ragged last pixel block masked by Pallas

    compute_dtype = jnp.bfloat16 if use_bf16_matmul else x_nchw.dtype
    # Weights are tiny; casting them in the wrapper is negligible.  Activations
    # are cast inside the kernel (no extra HBM pass).
    w1_m = w1.astype(compute_dtype)
    w2_m = w2.astype(compute_dtype)
    # Biases as (C, 1) so they broadcast over the lane (pixel) axis, kept f32.
    b1_c = b1.reshape(C_mid, 1).astype(jnp.float32)
    b2_c = b2.reshape(C_out, 1).astype(jnp.float32)

    kernel = functools.partial(_ffb_kernel, chunk_px=chunk_px,
                               approximate_gelu=approximate_gelu)

    out_pix = pl.pallas_call(
        kernel,
        out_shape=jax.ShapeDtypeStruct((N, C_out, HW), out_dtype),
        grid_spec=pltpu.PrefetchScalarGridSpec(
            num_scalar_prefetch=0,
            grid=grid,
            in_specs=[
                # x: (batch squeezed, all channels, pixel tile)
                pl.BlockSpec((None, C_in, tile_px), lambda n, i: (n, 0, i)),
                # weights / biases: VMEM-resident (constant index_map)
                pl.BlockSpec((C_mid, C_in), lambda n, i: (0, 0)),
                pl.BlockSpec((C_mid, 1), lambda n, i: (0, 0)),
                pl.BlockSpec((C_out, C_mid), lambda n, i: (0, 0)),
                pl.BlockSpec((C_out, 1), lambda n, i: (0, 0)),
            ],
            out_specs=pl.BlockSpec((None, C_out, tile_px),
                                   lambda n, i: (n, 0, i)),
        ),
        compiler_params=pltpu.CompilerParams(
            dimension_semantics=("parallel", "parallel")),
    )(x_pix, w1_m, b1_c, w2_m, b2_c)

    # (N, C_out, H*W) -> NCHW: free contiguous reshape.
    return out_pix.reshape(N, C_out, H, W)


def reference(x_nchw, w1, b1, w2, b2):
    # pure-JAX f32 reference of the same forward pass (NCHW)
    h = jnp.einsum('nchw,oc->nohw', x_nchw, w1) + b1[None, :, None, None]
    h = _gelu(h, approximate=False)
    y = jnp.einsum('nchw,oc->nohw', h, w2) + b2[None, :, None, None]
    return y


if __name__ == "__main__":
    key = jax.random.PRNGKey(0)
    kx, k1, kb1, k2, kb2, kx2 = jax.random.split(key, 6)

    fno_layer_size = 32
    factor = 2
    C_in = fno_layer_size
    C_mid = factor * fno_layer_size
    C_out = fno_layer_size

    # Deterministic init mimicking PyTorch Conv default (kaiming-uniform-ish)
    bound1 = 1.0 / math.sqrt(C_in)
    w1 = jax.random.uniform(k1, (C_mid, C_in), jnp.float32, -bound1, bound1)
    b1 = jax.random.uniform(kb1, (C_mid,), jnp.float32, -bound1, bound1)
    bound2 = 1.0 / math.sqrt(C_mid)
    w2 = jax.random.uniform(k2, (C_out, C_mid), jnp.float32, -bound2, bound2)
    b2 = jax.random.uniform(kb2, (C_out,), jnp.float32, -bound2, bound2)

    # --- Test 1: small image, N=2 (HW = 256, one lane-dense block per batch) ---
    N, H, W = 2, 16, 16
    x = jax.random.normal(kx, (N, C_in, H, W), dtype=jnp.float32)

    out_exact = feed_forward_block(x, w1, b1, w2, b2, use_bf16_matmul=False)
    out_exact = jax.block_until_ready(out_exact)
    out_fast = feed_forward_block(x, w1, b1, w2, b2)  # default: bf16 operands
    out_fast = jax.block_until_ready(out_fast)

    ref = reference(x, w1, b1, w2, b2)
    assert out_exact.shape == (N, C_out, H, W)
    assert jnp.allclose(out_exact, ref, atol=1e-5, rtol=1e-5)
    # bf16 MXU operands: looser tolerance (documented precision trade-off).
    assert jnp.allclose(out_fast, ref, atol=5e-2, rtol=5e-2)

    # --- Test 2: N=1, ragged pixel count (HW = 1600) exercising the cdiv grid,
    #     masked edge block, v7x pixel split and the in-kernel chunk loop. ---
    N2, H2, W2 = 1, 40, 40
    x2 = jax.random.normal(kx2, (N2, C_in, H2, W2), dtype=jnp.float32)

    out2_exact = feed_forward_block(x2, w1, b1, w2, b2, use_bf16_matmul=False)
    out2_exact = jax.block_until_ready(out2_exact)
    out2_fast = feed_forward_block(x2, w1, b1, w2, b2)
    out2_fast = jax.block_until_ready(out2_fast)

    ref2 = reference(x2, w1, b1, w2, b2)
    assert out2_exact.shape == (N2, C_out, H2, W2)
    assert jnp.allclose(out2_exact, ref2, atol=1e-5, rtol=1e-5)
    assert jnp.allclose(out2_fast, ref2, atol=5e-2, rtol=5e-2)

    print("KERNEL_OK")
</pallas_src>

<mosaic_0001>
module attributes {stable_mosaic.version = 11 : i64} {
  func.func @_ffb_kernel(%arg0: i32, %arg1: i32, %arg2: memref<1x32x256xf32, #tpu.memory_space<vmem>>, %arg3: memref<64x32xf32, #tpu.memory_space<vmem>>, %arg4: memref<64x1xf32, #tpu.memory_space<vmem>>, %arg5: memref<32x64xf32, #tpu.memory_space<vmem>>, %arg6: memref<32x1xf32, #tpu.memory_space<vmem>>, %arg7: memref<1x32x256xf32, #tpu.memory_space<vmem>>) attributes {dimension_semantics = [#tpu.dimension_semantics<parallel>, #tpu.dimension_semantics<parallel>], iteration_bounds = array<i64: 2, 1>, scalar_prefetch = 0 : i64, scratch_operands = 0 : i64, tpu.core_type = #tpu.core_type<tc>, window_params = [{transform_indices = @transform_0, window_bounds = array<i64: 1, 32, 256>}, {pipeline_mode = #tpu.pipeline_mode<synchronous>, transform_indices = @transform_1, window_bounds = array<i64: 64, 32>}, {pipeline_mode = #tpu.pipeline_mode<synchronous>, transform_indices = @transform_2, window_bounds = array<i64: 64, 1>}, {pipeline_mode = #tpu.pipeline_mode<synchronous>, transform_indices = @transform_3, window_bounds = array<i64: 32, 64>}, {pipeline_mode = #tpu.pipeline_mode<synchronous>, transform_indices = @transform_4, window_bounds = array<i64: 32, 1>}, {transform_indices = @transform_5, window_bounds = array<i64: 1, 32, 256>}]} {
    %c0 = arith.constant 0 : index
    %c0_0 = arith.constant 0 : index
    %0 = vector.load %arg3[%c0, %c0_0] : memref<64x32xf32, #tpu.memory_space<vmem>>, vector<64x32xf32>
    %c0_1 = arith.constant 0 : index
    %c0_2 = arith.constant 0 : index
    %1 = vector.load %arg5[%c0_1, %c0_2] : memref<32x64xf32, #tpu.memory_space<vmem>>, vector<32x64xf32>
    %c0_3 = arith.constant 0 : index
    %c0_4 = arith.constant 0 : index
    %2 = vector.load %arg4[%c0_3, %c0_4] : memref<64x1xf32, #tpu.memory_space<vmem>>, vector<64x1xf32>
    %c0_5 = arith.constant 0 : index
    %c0_6 = arith.constant 0 : index
    %3 = vector.load %arg6[%c0_5, %c0_6] : memref<32x1xf32, #tpu.memory_space<vmem>>, vector<32x1xf32>
    %c0_7 = arith.constant 0 : index
    %c0_8 = arith.constant 0 : index
    %c0_9 = arith.constant 0 : index
    %4 = vector.load %arg2[%c0_7, %c0_8, %c0_9] : memref<1x32x256xf32, #tpu.memory_space<vmem>>, vector<1x32x256xf32>
    %5 = vector.shape_cast %4 : vector<1x32x256xf32> to vector<32x256xf32>
    %cst = arith.constant dense<0.000000e+00> : vector<64x256xf32>
    %6 = tpu.matmul %0, %5, %cst {dimension_numbers = #tpu.dot_dimension_numbers<[1], [0], [0], [1], [0, 0, 1, 1], [], []>} : vector<64x32xf32>, vector<32x256xf32>, vector<64x256xf32> -> vector<64x256xf32>
    %7 = vector.broadcast %2 : vector<64x1xf32> to vector<64x256xf32>
    %8 = arith.addf %6, %7 : vector<64x256xf32>
    %cst_10 = arith.constant 5.000000e-01 : f32
    %9 = vector.broadcast %cst_10 : f32 to vector<64x256xf32>
    %10 = arith.mulf %9, %8 : vector<64x256xf32>
    %cst_11 = arith.constant 0.707106769 : f32
    %11 = vector.broadcast %cst_11 : f32 to vector<64x256xf32>
    %12 = arith.mulf %8, %11 : vector<64x256xf32>
    %13 = math.erf %12 : vector<64x256xf32>
    %cst_12 = arith.constant 1.000000e+00 : f32
    %14 = vector.broadcast %cst_12 : f32 to vector<64x256xf32>
    %15 = arith.addf %14, %13 : vector<64x256xf32>
    %16 = arith.mulf %10, %15 : vector<64x256xf32>
    %cst_13 = arith.constant dense<0.000000e+00> : vector<32x256xf32>
    %17 = tpu.matmul %1, %16, %cst_13 {dimension_numbers = #tpu.dot_dimension_numbers<[1], [0], [0], [1], [0, 0, 1, 1], [], []>} : vector<32x64xf32>, vector<64x256xf32>, vector<32x256xf32> -> vector<32x256xf32>
    %18 = vector.broadcast %3 : vector<32x1xf32> to vector<32x256xf32>
    %19 = arith.addf %17, %18 : vector<32x256xf32>
    %c0_14 = arith.constant 0 : index
    %c0_15 = arith.constant 0 : index
    %c0_16 = arith.constant 0 : index
    %20 = vector.load %arg7[%c0_14, %c0_15, %c0_16] : memref<1x32x256xf32, #tpu.memory_space<vmem>>, vector<1x32x256xf32>
    %21 = vector.shape_cast %20 : vector<1x32x256xf32> to vector<32x256xf32>
    %22 = vector.shape_cast %19 : vector<32x256xf32> to vector<1x32x256xf32>
    tpu.vector_store %arg7[%c0_14, %c0_15, %c0_16], %22 {strides = array<i32>} : memref<1x32x256xf32, #tpu.memory_space<vmem>>, vector<1x32x256xf32>,
    return
  }
  func.func @transform_0(%arg0: i32, %arg1: i32) -> (i32, i32, i32) {
    %c0_i32 = arith.constant 0 : i32
    %c0_i32_0 = arith.constant 0 : i32
    return %arg0, %c0_i32, %arg1 : i32, i32, i32
  }
  func.func @transform_1(%arg0: i32, %arg1: i32) -> (i32, i32) {
    %c0_i32 = arith.constant 0 : i32
    %c0_i32_0 = arith.constant 0 : i32
    %c0_i32_1 = arith.constant 0 : i32
    return %c0_i32, %c0_i32_0 : i32, i32
  }
  func.func @transform_2(%arg0: i32, %arg1: i32) -> (i32, i32) {
    %c0_i32 = arith.constant 0 : i32
    %c0_i32_0 = arith.constant 0 : i32
    %c0_i32_1 = arith.constant 0 : i32
    return %c0_i32, %c0_i32_0 : i32, i32
  }
  func.func @transform_3(%arg0: i32, %arg1: i32) -> (i32, i32) {
    %c0_i32 = arith.constant 0 : i32
    %c0_i32_0 = arith.constant 0 : i32
    %c0_i32_1 = arith.constant 0 : i32
    return %c0_i32, %c0_i32_0 : i32, i32
  }
  func.func @transform_4(%arg0: i32, %arg1: i32) -> (i32, i32) {
    %c0_i32 = arith.constant 0 : i32
    %c0_i32_0 = arith.constant 0 : i32
    %c0_i32_1 = arith.constant 0 : i32
    return %c0_i32, %c0_i32_0 : i32, i32
  }
  func.func @transform_5(%arg0: i32, %arg1: i32) -> (i32, i32, i32) {
    %c0_i32 = arith.constant 0 : i32
    %c0_i32_0 = arith.constant 0 : i32
    return %arg0, %c0_i32, %arg1 : i32, i32, i32
  }
}

</mosaic_0001>

<llo_original>
// kernel: tpu_custom_call.1
$region0: #{tpu_custom_call.1}
  #allocation0 [shape = 'u32[]', space=smem, size = 0x4, offset = 0x4, fixed_abs, tag = 'smem constant byte address 0x4 - core index']
  #allocation1 [shape = 'u32[72,128]{1,0:T(1,128)}', space=vmem, size = 0x9000, scoped, tag = 'internal scratch']
  %s0 = inlined_call_operand.vmem [shape: f32[2,32,256], index: 0, kind: input, shape index: {}]
  %s1 = inlined_call_operand.vmem [shape: f32[64,32], index: 1, kind: input, shape index: {}]
  %s2 = inlined_call_operand.vmem [shape: f32[64,1], index: 2, kind: input, shape index: {}]
  %s3 = inlined_call_operand.vmem [shape: f32[32,64], index: 3, kind: input, shape index: {}]
  %s4 = inlined_call_operand.vmem [shape: f32[32,1], index: 4, kind: input, shape index: {}]
  %s5 = inlined_call_operand.hbm [shape: f32[2,32,256], index: 5, kind: output, shape index: {}]
  %s6 = sld [smem:[#allocation0]]
  $region53: #{tpu_custom_call.1} parent=0
    _
  %s8 = ssub.s32 1, %s6
  %s9 = scalar_select 0, %s8, %s6
  $region1: #{tpu_custom_call.1} parent=0
    #allocation2 [shape = 'u8[65536]{0}', space=vmem, size = 0x10000, scoped, tag = 'output window, operand 0']
    #allocation3 [shape = 's32[2]{0}', space=sflag, size = 0x8, scoped, tag = 'scoped memory for tpu_custom_call.1']
    %10 = vsyncpa [#allocation3], 0
    %s11 = scalar_lea.sflag [#allocation3], 1
    %12 = vsyncpa %s11, 0
    loop: start=0, step=1, limit=4
    $region2: #{tpu_custom_call.1} parent=1 // loop_pre_header
      _
    $region3: #{tpu_custom_call.1} parent=1 // loop_header
      %s14 = sphi 0, %s18
      %p15 = scmp.ge.s32.totalorder %s14, 4
      %s21 = sphi 0, %s33
      %s22 = sphi 0, %s29
      %s23 = sphi 0, %s21
      %s24 = sphi 0, %s22
      %s25 = sphi 0, %s23
      %s26 = sphi 0, %s24
      %s38 = sphi 0, %s40
      %s41 = sphi 0, %s38
      %s42 = sphi 0, %s41
      %s58 = sphi 0, %s42
      %s62 = sphi 0, %s62
      %s64 = sphi 0, %s62
      %s65 = sphi 0, %s64
      %s79 = sphi 0, %s65
      %s83 = sphi 0, %s83
      %s85 = sphi 0, %s83
      %s86 = sphi 0, %s85
      %s100 = sphi 0, %s86
      %s104 = sphi 0, %s104
      %s106 = sphi 0, %s104
      %s107 = sphi 0, %s106
      %s121 = sphi 0, %s107
      %s125 = sphi 0, %s125
      %s127 = sphi 0, %s125
      %s128 = sphi 0, %s127
      %s142 = sphi 0, %s128
      %s150 = sphi 0, %s152
      %s153 = sphi 0, %s150
      %s154 = sphi 0, %s153
      %s170 = sphi 0, %s154
    $region4: #{tpu_custom_call.1} parent=1 // loop_header_branch
      %17 = sbr.rel (%p15) target = $region8
    $region5: #{tpu_custom_call.1} parent=1 // loop_body
      %s19 = ssub.s32 %s14, 1
      %s20 = ssub.s32 %s14, 2
      %s27 = sadd.s32 1, %s22
      %p28 = scmp.ge.s32.totalorder %s27, 1
      %s29 = scalar_select %p28, 0, %s27
      %s30 = sadd.s32 1, %s21
      %s31 = scalar_select %p28, %s30, %s21
      %p32 = scmp.ge.s32.totalorder %s31, 2
      %s33 = scalar_select %p32, 0, %s31
      %s34 = ssub.s32 %s21, %s33
      %s35 = ssub.s32 %s22, %s29
      %s36 = sor.u32 %s34, %s35
      %p37 = scmp.eq.s32.totalorder %s36, 0
      %s39 = sadd.s32 %s38, 1
      %s40 = scalar_select %p37, %s38, %s39
      %p43 = pneg %p37
      %p44 = scmp.eq.s32.totalorder %s14, 1
      %p45 = por %p43, %p44
      %p46 = scmp.ne.s32.totalorder %s38, %s41
      %p47 = scmp.eq.s32.totalorder %s14, 0
      %p48 = por %p46, %p47
      %p49 = scmp.ne.s32.totalorder %s38, %s41
      %p50 = scmp.eq.s32.totalorder %s19, 1
      %p51 = por %p49, %p50
      %p52 = scmp.ne.s32.totalorder %s41, %s42
      %p53 = scmp.eq.s32.totalorder %s19, 0
      %p54 = por %p52, %p53
      %p55 = scmp.ne.s32.totalorder %s41, %s42
      %p56 = scmp.eq.s32.totalorder %s20, 1
      %p57 = por %p55, %p56
      %p59 = scmp.ne.s32.totalorder %s42, %s58
      %p60 = scmp.eq.s32.totalorder %s20, 0
      %p61 = por %p59, %p60
      %s63 = sadd.s32 %s62, 1
      %p66 = scmp.eq.s32.totalorder %s14, 1
      %p67 = scmp.ne.s32.totalorder %s62, %s64
      %p68 = scmp.eq.s32.totalorder %s14, 0
      %p69 = por %p67, %p68
      %p70 = scmp.ne.s32.totalorder %s62, %s64
      %p71 = scmp.eq.s32.totalorder %s19, 1
      %p72 = por %p70, %p71
      %p73 = scmp.ne.s32.totalorder %s64, %s65
      %p74 = scmp.eq.s32.totalorder %s19, 0
      %p75 = por %p73, %p74
      %p76 = scmp.ne.s32.totalorder %s64, %s65
      %p77 = scmp.eq.s32.totalorder %s20, 1
      %p78 = por %p76, %p77
      %p80 = scmp.ne.s32.totalorder %s65, %s79
      %p81 = scmp.eq.s32.totalorder %s20, 0
      %p82 = por %p80, %p81
      %s84 = sadd.s32 %s83, 1
      %p87 = scmp.eq.s32.totalorder %s14, 1
      %p88 = scmp.ne.s32.totalorder %s83, %s85
      %p89 = scmp.eq.s32.totalorder %s14, 0
      %p90 = por %p88, %p89
      %p91 = scmp.ne.s32.totalorder %s83, %s85
      %p92 = scmp.eq.s32.totalorder %s19, 1
      %p93 = por %p91, %p92
      %p94 = scmp.ne.s32.totalorder %s85, %s86
      %p95 = scmp.eq.s32.totalorder %s19, 0
      %p96 = por %p94, %p95
      %p97 = scmp.ne.s32.totalorder %s85, %s86
      %p98 = scmp.eq.s32.totalorder %s20, 1
      %p99 = por %p97, %p98
      %p101 = scmp.ne.s32.totalorder %s86, %s100
      %p102 = scmp.eq.s32.totalorder %s20, 0
      %p103 = por %p101, %p102
      %s105 = sadd.s32 %s104, 1
      %p108 = scmp.eq.s32.totalorder %s14, 1
      %p109 = scmp.ne.s32.totalorder %s104, %s106
      %p110 = scmp.eq.s32.totalorder %s14, 0
      %p111 = por %p109, %p110
      %p112 = scmp.ne.s32.totalorder %s104, %s106
      %p113 = scmp.eq.s32.totalorder %s19, 1
      %p114 = por %p112, %p113
      %p115 = scmp.ne.s32.totalorder %s106, %s107
      %p116 = scmp.eq.s32.totalorder %s19, 0
      %p117 = por %p115, %p116
      %p118 = scmp.ne.s32.totalorder %s106, %s107
      %p119 = scmp.eq.s32.totalorder %s20, 1
      %p120 = por %p118, %p119
      %p122 = scmp.ne.s32.totalorder %s107, %s121
      %p123 = scmp.eq.s32.totalorder %s20, 0
      %p124 = por %p122, %p123
      %s126 = sadd.s32 %s125, 1
      %p129 = scmp.eq.s32.totalorder %s14, 1
      %p130 = scmp.ne.s32.totalorder %s125, %s127
      %p131 = scmp.eq.s32.totalorder %s14, 0
      %p132 = por %p130, %p131
      %p133 = scmp.ne.s32.totalorder %s125, %s127
      %p134 = scmp.eq.s32.totalorder %s19, 1
      %p135 = por %p133, %p134
      %p136 = scmp.ne.s32.totalorder %s127, %s128
      %p137 = scmp.eq.s32.totalorder %s19, 0
      %p138 = por %p136, %p137
      %p139 = scmp.ne.s32.totalorder %s127, %s128
      %p140 = scmp.eq.s32.totalorder %s20, 1
      %p141 = por %p139, %p140
      %p143 = scmp.ne.s32.totalorder %s128, %s142
      %p144 = scmp.eq.s32.totalorder %s20, 0
      %p145 = por %p143, %p144
      %s146 = ssub.s32 %s21, %s33
      %s147 = ssub.s32 %s22, %s29
      %s148 = sor.u32 %s146, %s147
      %p149 = scmp.eq.s32.totalorder %s148, 0
      %s151 = sadd.s32 %s150, 1
      %s152 = scalar_select %p149, %s150, %s151
      %p155 = pneg %p149
      %p156 = scmp.eq.s32.totalorder %s14, 1
      %p157 = por %p155, %p156
      %p158 = scmp.ne.s32.totalorder %s150, %s153
      %p159 = scmp.eq.s32.totalorder %s14, 0
      %p160 = por %p158, %p159
      %p161 = scmp.ne.s32.totalorder %s150, %s153
      %p162 = scmp.eq.s32.totalorder %s19, 1
      %p163 = por %p161, %p162
      %p164 = scmp.ne.s32.totalorder %s153, %s154
      %p165 = scmp.eq.s32.totalorder %s19, 0
      %p166 = por %p164, %p165
      %p167 = scmp.ne.s32.totalorder %s153, %s154
      %p168 = scmp.eq.s32.totalorder %s20, 1
      %p169 = por %p167, %p168
      %p171 = scmp.ne.s32.totalorder %s154, %s170
      %p172 = scmp.eq.s32.totalorder %s20, 0
      %p173 = por %p171, %p172
      %p174 = scmp.le.s32.totalorder 1, %s14
      %p175 = scmp.lt.s32.totalorder %s14, 3
      %p176 = pnand %p174, %p175
      %p177 = pneg %p176
      // Predicated region
      $region9: #{tpu_custom_call.1} parent=5 // pred_check
        _
      $region10: #{tpu_custom_call.1} parent=5 // pred_check_branch
        %179 = sbr.rel (%p176) target = $region12
      $region11: #{tpu_custom_call.1} parent=5 // pred_region
        %s180 = ssub.s32 %s14, 1
        // Predicated region
        $region13: #{tpu_custom_call.1} parent=11 // pred_check
          %p181 = pneg %p75
        $region14: #{tpu_custom_call.1} parent=11 // pred_check_branch
          %183 = sbr.rel (%p181) target = $region16
        $region15: #{tpu_custom_call.1} parent=11 // pred_region
          _
        $region16: #{tpu_custom_call.1} parent=11 // pred_fallthru
          _
        // Predicated region
        $region17: #{tpu_custom_call.1} parent=11 // pred_check
          %p184 = pneg %p96
        $region18: #{tpu_custom_call.1} parent=11 // pred_check_branch
          %186 = sbr.rel (%p184) target = $region20
        $region19: #{tpu_custom_call.1} parent=11 // pred_region
          _
        $region20: #{tpu_custom_call.1} parent=11 // pred_fallthru
          _
        // Predicated region
        $region21: #{tpu_custom_call.1} parent=11 // pred_check
          %p187 = pneg %p117
        $region22: #{tpu_custom_call.1} parent=11 // pred_check_branch
          %189 = sbr.rel (%p187) target = $region24
        $region23: #{tpu_custom_call.1} parent=11 // pred_region
          _
        $region24: #{tpu_custom_call.1} parent=11 // pred_fallthru
          _
        // Predicated region
        $region25: #{tpu_custom_call.1} parent=11 // pred_check
          %p190 = pneg %p138
        $region26: #{tpu_custom_call.1} parent=11 // pred_check_branch
          %192 = sbr.rel (%p190) target = $region28
        $region27: #{tpu_custom_call.1} parent=11 // pred_region
          _
        $region28: #{tpu_custom_call.1} parent=11 // pred_fallthru
          _
      $region12: #{tpu_custom_call.1} parent=5 // pred_fallthru
        _
      %p193 = scmp.lt.s32.totalorder %s14, 2
      // Predicated region
      $region29: #{tpu_custom_call.1} parent=5 // pred_check
        %p194 = pneg %p193
      $region30: #{tpu_custom_call.1} parent=5 // pred_check_branch
        %196 = sbr.rel (%p194) target = $region32
      $region31: #{tpu_custom_call.1} parent=5 // pred_region
        // Predicated region
        $region33: #{tpu_custom_call.1} parent=31 // pred_check
          %p197 = pneg %p48
        $region34: #{tpu_custom_call.1} parent=31 // pred_check_branch
          %199 = sbr.rel (%p197) target = $region36
        $region35: #{tpu_custom_call.1} parent=31 // pred_region
          %s200 = smul.u32 2, %s22
          %p201 = scmp.lt.s32.totalorder %s21, 1
          %s202 = scalar_select %p201, %s21, 1
          %p203 = scmp.lt.s32.totalorder %s200, 1
          %s204 = scalar_select %p203, %s200, 1
          %s205 = smul.addr %s202, 8
          %s206 = sadd.s32 %s204, %s205
          %s207 = smul.addr %s206, 8
          %s208 = scalar_lea.vmem %s0, %s207
          %s209 = smul.u32 2, %s22
        $region36: #{tpu_custom_call.1} parent=31 // pred_fallthru
          _
      $region32: #{tpu_custom_call.1} parent=5 // pred_fallthru
        _
      %p210 = scmp.le.s32.totalorder 1, %s14
      %p211 = scmp.lt.s32.totalorder %s14, 3
      %p212 = pnand %p210, %p211
      %p213 = pneg %p212
      // Predicated region
      $region37: #{tpu_custom_call.1} parent=5 // pred_check
        _
      $region38: #{tpu_custom_call.1} parent=5 // pred_check_branch
        %215 = sbr.rel (%p212) target = $region40
      $region39: #{tpu_custom_call.1} parent=5 // pred_region
        %s216 = ssub.s32 %s14, 1
        %s217 = smul.u32 2, %s24
        %p218 = scmp.lt.s32.totalorder %s23, 1
        %s219 = scalar_select %p218, %s23, 1
        %p220 = scmp.lt.s32.totalorder %s217, 1
        %s221 = scalar_select %p220, %s217, 1
        %s222 = smul.addr %s219, 8
        %s223 = sadd.s32 %s221, %s222
        %s224 = smul.addr %s223, 8
        %s225 = scalar_lea.vmem %s0, %s224
        %p226 = pneg %p54
        %p227 = pneg %p51
        %p228 = pneg %p75
        %p229 = pneg %p72
        %p230 = pneg %p96
        %p231 = pneg %p93
        %p232 = pneg %p117
        %p233 = pneg %p114
        %p234 = pneg %p138
        %p235 = pneg %p135
        %p236 = pneg %p166
        %p237 = pneg %p163
        %s238 = sand.u32 %s153, 1
        %s239 = scalar_lea.sflag [#allocation3], %s238
        %s240 = sand.u32 %s153, 1
        %s241 = smul.addr %s240, 64
        %s242 = scalar_lea.vmem [#allocation2], %s241
        %s243 = smul.u32 2, %s24
        %p244 = scmp.lt.s32.totalorder %s23, 1
        %s245 = scalar_select %p244, %s23, 1
        %p246 = scmp.lt.s32.totalorder %s243, 1
        %s247 = scalar_select %p246, %s243, 1
        %s248 = smul.addr %s245, 8
        %s249 = sadd.s32 %s247, %s248
        %s250 = smul.addr %s249, 8
        %s251 = scalar_lea.vmem %s0, %s250
        %s252 = smul.u32 2, %s24
        %s253 = smul.u32 2, %s24
        %v254 = vld [vmem:[%s1] sm:$0xff]
        %v255 = vld [vmem:[%s1 + $0x8] sm:$0xff]
        %v256 = vld [vmem:[%s1 + $0x10] sm:$0xff]
        %v257 = vld [vmem:[%s1 + $0x18] sm:$0xff]
        %v258 = vld [vmem:[%s1 + $0x20] sm:$0xff]
        %v259 = vld [vmem:[%s1 + $0x28] sm:$0xff]
        %v260 = vld [vmem:[%s1 + $0x30] sm:$0xff]
        %v261 = vld [vmem:[%s1 + $0x38] sm:$0xff]
        %v262 = vld [vmem:[%s3] sm:$0xff]
        %v263 = vld [vmem:[%s3 + $0x8] sm:$0xff]
        %v264 = vld [vmem:[%s3 + $0x10] sm:$0xff]
        %v265 = vld [vmem:[%s3 + $0x18] sm:$0xff]
        %v266 = vld [vmem:[%s2] sm:$0xff]
        %v267 = vld [vmem:[%s2 + $0x8] sm:$0xff]
        %v268 = vld [vmem:[%s2 + $0x10] sm:$0xff]
        %v269 = vld [vmem:[%s2 + $0x18] sm:$0xff]
        %v270 = vld [vmem:[%s2 + $0x20] sm:$0xff]
        %v271 = vld [vmem:[%s2 + $0x28] sm:$0xff]
        %v272 = vld [vmem:[%s2 + $0x30] sm:$0xff]
        %v273 = vld [vmem:[%s2 + $0x38] sm:$0xff]
        %v274 = vld [vmem:[%s4] sm:$0xff]
        %v275 = vld [vmem:[%s4 + $0x8] sm:$0xff]
        %v276 = vld [vmem:[%s4 + $0x10] sm:$0xff]
        %v277 = vld [vmem:[%s4 + $0x18] sm:$0xff]
        %v278 = vld [vmem:[%s251] sm:$0xff]
        %v279 = vld [vmem:[%s251 + $0x8] sm:$0xff]
        %v280 = vld [vmem:[%s251 + $0x10] sm:$0xff]
        %v281 = vld [vmem:[%s251 + $0x18] sm:$0xff]
        %v282 = vld [vmem:[%s251 + $0x20] sm:$0xff]
        %v283 = vld [vmem:[%s251 + $0x28] sm:$0xff]
        %v284 = vld [vmem:[%s251 + $0x30] sm:$0xff]
        %v285 = vld [vmem:[%s251 + $0x38] sm:$0xff]
        %287 = vset.pattern.permute.xlu0 0
        %288 = vperm.xlu0 %287, %v266
        %v289 = vpop.permute.xlu0 %288
        %292 = vset.pattern.permute.xlu0 0
        %293 = vperm.xlu0 %292, %v267
        %v294 = vpop.permute.xlu0 %293
        %297 = vset.pattern.permute.xlu0 0
        %298 = vperm.xlu0 %297, %v268
        %v299 = vpop.permute.xlu0 %298
        %302 = vset.pattern.permute.xlu0 0
        %303 = vperm.xlu0 %302, %v269
        %v304 = vpop.permute.xlu0 %303
        %307 = vset.pattern.permute.xlu0 0
        %308 = vperm.xlu0 %307, %v270
        %v309 = vpop.permute.xlu0 %308
        %312 = vset.pattern.permute.xlu0 0
        %313 = vperm.xlu0 %312, %v271
        %v314 = vpop.permute.xlu0 %313
        %317 = vset.pattern.permute.xlu0 0
        %318 = vperm.xlu0 %317, %v272
        %v319 = vpop.permute.xlu0 %318
        %322 = vset.pattern.permute.xlu0 0
        %323 = vperm.xlu0 %322, %v273
        %v324 = vpop.permute.xlu0 %323
        %vm326 = vcmask 261120
        %v328 = vsel %vm326, %v254, 0
        %v331 = vsel %vm326, %v255, 0
        %v334 = vsel %vm326, %v256, 0
        %v337 = vsel %vm326, %v257, 0
        %v340 = vsel %vm326, %v258, 0
        %v343 = vsel %vm326, %v259, 0
        %v346 = vsel %vm326, %v260, 0
        %v349 = vsel %vm326, %v261, 0
        %351 = vmatpush.msra.mxu0 0.0
        %352 = vmatpush.msra.mxu0 0.0
        %353 = vmatpush.msra.mxu0 0.0
        %354 = vmatpush.msra.mxu0 0.0
        %355 = vmatpush.msra.mxu0 0.0
        %356 = vmatpush.msra.mxu0 0.0
        %357 = vmatpush.msra.mxu0 0.0
        %358 = vmatpush.msra.mxu0 0.0
        %359 = vmatpush.msra.mxu0 0.0
        %360 = vmatpush.msra.mxu0 0.0
        %361 = vmatpush.msra.mxu0 0.0
        %362 = vmatpush.msra.mxu0 0.0
        %363 = vmatpush.msra.mxu0 %v284
        %364 = vmatpush.msra.mxu0 %v282
        %365 = vmatpush.msra.mxu0 %v280
        %366 = vmatpush.msra.mxu0 %v278
        %367 = vmatmul.f32.gmra.mxu0 %v328
        %v368 = vpop.f32.mrf.mxu0
        %v369 = vadd.f32 %v289, %v368
        %370 = vmatmul.f32.gmra.mxu0 %v331
        %v371 = vpop.f32.mrf.mxu0
        %v372 = vadd.f32 %v294, %v371
        %373 = vmatmul.f32.gmra.mxu0 %v334
        %v374 = vpop.f32.mrf.mxu0
        %v375 = vadd.f32 %v299, %v374
        %376 = vmatmul.f32.gmra.mxu0 %v337
        %v377 = vpop.f32.mrf.mxu0
        %v378 = vadd.f32 %v304, %v377
        %379 = vmatmul.f32.gmra.mxu0 %v340
        %v380 = vpop.f32.mrf.mxu0
        %v381 = vadd.f32 %v309, %v380
        %382 = vmatmul.f32.gmra.mxu0 %v343
        %v383 = vpop.f32.mrf.mxu0
        %v384 = vadd.f32 %v314, %v383
        %385 = vmatmul.f32.gmra.mxu0 %v346
        %v386 = vpop.f32.mrf.mxu0
        %v387 = vadd.f32 %v319, %v386
        %388 = vmatmul.f32.gmra.mxu0 %v349
        %v389 = vpop.f32.mrf.mxu0
        %v390 = vadd.f32 %v324, %v389
        %391 = vdwg.mxu0
        %392 = vmatpush.msra.mxu0 0.0
        %393 = vmatpush.msra.mxu0 0.0
        %394 = vmatpush.msra.mxu0 0.0
        %395 = vmatpush.msra.mxu0 0.0
        %396 = vmatpush.msra.mxu0 0.0
        %397 = vmatpush.msra.mxu0 0.0
        %398 = vmatpush.msra.mxu0 0.0
        %399 = vmatpush.msra.mxu0 0.0
        %400 = vmatpush.msra.mxu0 0.0
        %401 = vmatpush.msra.mxu0 0.0
        %402 = vmatpush.msra.mxu0 0.0
        %403 = vmatpush.msra.mxu0 0.0
        %404 = vmatpush.msra.mxu0 %v285
        %405 = vmatpush.msra.mxu0 %v283
        %406 = vmatpush.msra.mxu0 %v281
        %407 = vmatpush.msra.mxu0 %v279
        %408 = vmatmul.f32.gmra.mxu0 %v328
        %v409 = vpop.f32.mrf.mxu0
        %v410 = vadd.f32 %v289, %v409
        %411 = vmatmul.f32.gmra.mxu0 %v331
        %v412 = vpop.f32.mrf.mxu0
        %v413 = vadd.f32 %v294, %v412
        %414 = vmatmul.f32.gmra.mxu0 %v334
        %v415 = vpop.f32.mrf.mxu0
        %v416 = vadd.f32 %v299, %v415
        %417 = vmatmul.f32.gmra.mxu0 %v337
        %v418 = vpop.f32.mrf.mxu0
        %v419 = vadd.f32 %v304, %v418
        %420 = vmatmul.f32.gmra.mxu0 %v340
        %v421 = vpop.f32.mrf.mxu0
        %v422 = vadd.f32 %v309, %v421
        %423 = vmatmul.f32.gmra.mxu0 %v343
        %v424 = vpop.f32.mrf.mxu0
        %v425 = vadd.f32 %v314, %v424
        %426 = vmatmul.f32.gmra.mxu0 %v346
        %v427 = vpop.f32.mrf.mxu0
        %v428 = vadd.f32 %v319, %v427
        %429 = vmatmul.f32.gmra.mxu0 %v349
        %v430 = vpop.f32.mrf.mxu0
        %v431 = vadd.f32 %v324, %v430
        %432 = vdwg.mxu0
        %v433 = vmul.f32 %v369, 0.5
        %v434 = vmul.f32 %v410, 0.5
        %v435 = vmul.f32 %v372, 0.5
        %v436 = vmul.f32 %v413, 0.5
        %v437 = vmul.f32 %v375, 0.5
        %v438 = vmul.f32 %v416, 0.5
        %v439 = vmul.f32 %v378, 0.5
        %v440 = vmul.f32 %v419, 0.5
        %v441 = vmul.f32 %v381, 0.5
        %v442 = vmul.f32 %v422, 0.5
        %v443 = vmul.f32 %v384, 0.5
        %v444 = vmul.f32 %v425, 0.5
        %v445 = vmul.f32 %v387, 0.5
        %v446 = vmul.f32 %v428, 0.5
        %v447 = vmul.f32 %v390, 0.5
        %v448 = vmul.f32 %v431, 0.5
        %v449 = vmul.f32 %v369, 0.70710677
        %v450 = vmul.f32 %v410, 0.70710677
        %v451 = vmul.f32 %v372, 0.70710677
        %v452 = vmul.f32 %v413, 0.70710677
        %v453 = vmul.f32 %v375, 0.70710677
        %v454 = vmul.f32 %v416, 0.70710677
        %v455 = vmul.f32 %v378, 0.70710677
        %v456 = vmul.f32 %v419, 0.70710677
        %v457 = vmul.f32 %v381, 0.70710677
        %v458 = vmul.f32 %v422, 0.70710677
        %v459 = vmul.f32 %v384, 0.70710677
        %v460 = vmul.f32 %v425, 0.70710677
        %v461 = vmul.f32 %v387, 0.70710677
        %v462 = vmul.f32 %v428, 0.70710677
        %v463 = vmul.f32 %v390, 0.70710677
        %v464 = vmul.f32 %v431, 0.70710677
        %v465 = vmul.f32 %v449, %v449
        %v466 = vmin.f32 16.0, %v465
        %v467 = vmul.f32 %v466, 2.1237322e-06
        %v468 = vadd.f32 %v467, 0.00028619796
        %v469 = vmul.f32 %v466, %v468
        %v470 = vadd.f32 %v469, 0.0036580483
        %v471 = vmul.f32 %v466, %v470
        %v472 = vadd.f32 %v471, 0.05243302
        %v473 = vmul.f32 %v466, %v472
        %v474 = vadd.f32 %v473, 0.18741608
        %v475 = vmul.f32 %v466, %v474
        %v476 = vadd.f32 %v475, 1.1283791
        %v477 = vmul.f32 %v449, %v476
        %v478 = vmul.f32 %v466, 3.8918573e-05
        %v479 = vadd.f32 %v478, 0.001143296
        %v480 = vmul.f32 %v466, %v479
        %v481 = vadd.f32 %v480, 0.014752088
        %v482 = vmul.f32 %v466, %v481
        %v483 = vadd.f32 %v482, 0.112945676
        %v484 = vmul.f32 %v466, %v483
        %v485 = vadd.f32 %v484, 0.4994258
        %v486 = vmul.f32 %v466, %v485
        %v487 = vadd.f32 %v486, 1.0
        %v488 = vrcp.pop %v487
        %v489 = vmul.f32 %v487, %v488
        %v490 = vsub.f32 1.0, %v489
        %v491 = vmul.f32 %v488, %v490
        %v492 = vadd.f32 %v488, %v491
        %vm493 = vweird.f32 %v487
        %vm494 = vweird.f32 %v488
        %vm495 = vmor %vm493, %vm494
        %v496 = vsel %vm495, %v488, %v492
        %v497 = vand.u32 2147483647, %v487
        %vm498 = vcmp.eq.f32.partialorder %v497, 8.507059e+37
        %v499 = vand.u32 %v487, 2147483648
        %v500 = vor.u32 1.1754944e-38, %v499
        %v501 = vsel %vm498, %v500, %v496
        %v502 = vmul.f32 %v477, %v501
        %v503 = vmin.f32 %v502, 1.0
        %v504 = vmax.f32 %v503, -1.0
        %v505 = vmul.f32 %v450, %v450
        %v506 = vmin.f32 16.0, %v505
        %v507 = vmul.f32 %v506, 2.1237322e-06
        %v508 = vadd.f32 %v507, 0.00028619796
        %v509 = vmul.f32 %v506, %v508
        %v510 = vadd.f32 %v509, 0.0036580483
        %v511 = vmul.f32 %v506, %v510
        %v512 = vadd.f32 %v511, 0.05243302
        %v513 = vmul.f32 %v506, %v512
        %v514 = vadd.f32 %v513, 0.18741608
        %v515 = vmul.f32 %v506, %v514
        %v516 = vadd.f32 %v515, 1.1283791
        %v517 = vmul.f32 %v450, %v516
        %v518 = vmul.f32 %v506, 3.8918573e-05
        %v519 = vadd.f32 %v518, 0.001143296
        %v520 = vmul.f32 %v506, %v519
        %v521 = vadd.f32 %v520, 0.014752088
        %v522 = vmul.f32 %v506, %v521
        %v523 = vadd.f32 %v522, 0.112945676
        %v524 = vmul.f32 %v506, %v523
        %v525 = vadd.f32 %v524, 0.4994258
        %v526 = vmul.f32 %v506, %v525
        %v527 = vadd.f32 %v526, 1.0
        %v528 = vrcp.pop %v527
        %v529 = vmul.f32 %v527, %v528
        %v530 = vsub.f32 1.0, %v529
        %v531 = vmul.f32 %v528, %v530
        %v532 = vadd.f32 %v528, %v531
        %vm533 = vweird.f32 %v527
        %vm534 = vweird.f32 %v528
        %vm535 = vmor %vm533, %vm534
        %v536 = vsel %vm535, %v528, %v532
        %v537 = vand.u32 2147483647, %v527
        %vm538 = vcmp.eq.f32.partialorder %v537, 8.507059e+37
        %v539 = vand.u32 %v527, 2147483648
        %v540 = vor.u32 1.1754944e-38, %v539
        %v541 = vsel %vm538, %v540, %v536
        %v542 = vmul.f32 %v517, %v541
        %v543 = vmin.f32 %v542, 1.0
        %v544 = vmax.f32 %v543, -1.0
        %v545 = vmul.f32 %v451, %v451
        %v546 = vmin.f32 16.0, %v545
        %v547 = vmul.f32 %v546, 2.1237322e-06
        %v548 = vadd.f32 %v547, 0.00028619796
        %v549 = vmul.f32 %v546, %v548
        %v550 = vadd.f32 %v549, 0.0036580483
        %v551 = vmul.f32 %v546, %v550
        %v552 = vadd.f32 %v551, 0.05243302
        %v553 = vmul.f32 %v546, %v552
        %v554 = vadd.f32 %v553, 0.18741608
        %v555 = vmul.f32 %v546, %v554
        %v556 = vadd.f32 %v555, 1.1283791
        %v557 = vmul.f32 %v451, %v556
        %v558 = vmul.f32 %v546, 3.8918573e-05
        %v559 = vadd.f32 %v558, 0.001143296
        %v560 = vmul.f32 %v546, %v559
        %v561 = vadd.f32 %v560, 0.014752088
        %v562 = vmul.f32 %v546, %v561
        %v563 = vadd.f32 %v562, 0.112945676
        %v564 = vmul.f32 %v546, %v563
        %v565 = vadd.f32 %v564, 0.4994258
        %v566 = vmul.f32 %v546, %v565
        %v567 = vadd.f32 %v566, 1.0
        %v568 = vrcp.pop %v567
        %v569 = vmul.f32 %v567, %v568
        %v570 = vsub.f32 1.0, %v569
        %v571 = vmul.f32 %v568, %v570
        %v572 = vadd.f32 %v568, %v571
        %vm573 = vweird.f32 %v567
        %vm574 = vweird.f32 %v568
        %vm575 = vmor %vm573, %vm574
        %v576 = vsel %vm575, %v568, %v572
        %v577 = vand.u32 2147483647, %v567
        %vm578 = vcmp.eq.f32.partialorder %v577, 8.507059e+37
        %v579 = vand.u32 %v567, 2147483648
        %v580 = vor.u32 1.1754944e-38, %v579
        %v581 = vsel %vm578, %v580, %v576
        %v582 = vmul.f32 %v557, %v581
        %v583 = vmin.f32 %v582, 1.0
        %v584 = vmax.f32 %v583, -1.0
        %v585 = vmul.f32 %v452, %v452
        %v586 = vmin.f32 16.0, %v585
        %v587 = vmul.f32 %v586, 2.1237322e-06
        %v588 = vadd.f32 %v587, 0.00028619796
        %v589 = vmul.f32 %v586, %v588
        %v590 = vadd.f32 %v589, 0.0036580483
        %v591 = vmul.f32 %v586, %v590
        %v592 = vadd.f32 %v591, 0.05243302
        %v593 = vmul.f32 %v586, %v592
        %v594 = vadd.f32 %v593, 0.18741608
        %v595 = vmul.f32 %v586, %v594
        %v596 = vadd.f32 %v595, 1.1283791
        %v597 = vmul.f32 %v452, %v596
        %v598 = vmul.f32 %v586, 3.8918573e-05
        %v599 = vadd.f32 %v598, 0.001143296
        %v600 = vmul.f32 %v586, %v599
        %v601 = vadd.f32 %v600, 0.014752088
        %v602 = vmul.f32 %v586, %v601
        %v603 = vadd.f32 %v602, 0.112945676
        %v604 = vmul.f32 %v586, %v603
        %v605 = vadd.f32 %v604, 0.4994258
        %v606 = vmul.f32 %v586, %v605
        %v607 = vadd.f32 %v606, 1.0
        %v608 = vrcp.pop %v607
        %v609 = vmul.f32 %v607, %v608
        %v610 = vsub.f32 1.0, %v609
        %v611 = vmul.f32 %v608, %v610
        %v612 = vadd.f32 %v608, %v611
        %vm613 = vweird.f32 %v607
        %vm614 = vweird.f32 %v608
        %vm615 = vmor %vm613, %vm614
        %v616 = vsel %vm615, %v608, %v612
        %v617 = vand.u32 2147483647, %v607
        %vm618 = vcmp.eq.f32.partialorder %v617, 8.507059e+37
        %v619 = vand.u32 %v607, 2147483648
        %v620 = vor.u32 1.1754944e-38, %v619
        %v621 = vsel %vm618, %v620, %v616
        %v622 = vmul.f32 %v597, %v621
        %v623 = vmin.f32 %v622, 1.0
        %v624 = vmax.f32 %v623, -1.0
        %v625 = vmul.f32 %v453, %v453
        %v626 = vmin.f32 16.0, %v625
        %v627 = vmul.f32 %v626, 2.1237322e-06
        %v628 = vadd.f32 %v627, 0.00028619796
        %v629 = vmul.f32 %v626, %v628
        %v630 = vadd.f32 %v629, 0.0036580483
        %v631 = vmul.f32 %v626, %v630
        %v632 = vadd.f32 %v631, 0.05243302
        %v633 = vmul.f32 %v626, %v632
        %v634 = vadd.f32 %v633, 0.18741608
        %v635 = vmul.f32 %v626, %v634
        %v636 = vadd.f32 %v635, 1.1283791
        %v637 = vmul.f32 %v453, %v636
        %v638 = vmul.f32 %v626, 3.8918573e-05
        %v639 = vadd.f32 %v638, 0.001143296
        %v640 = vmul.f32 %v626, %v639
        %v641 = vadd.f32 %v640, 0.014752088
        %v642 = vmul.f32 %v626, %v641
        %v643 = vadd.f32 %v642, 0.112945676
        %v644 = vmul.f32 %v626, %v643
        %v645 = vadd.f32 %v644, 0.4994258
        %v646 = vmul.f32 %v626, %v645
        %v647 = vadd.f32 %v646, 1.0
        %v648 = vrcp.pop %v647
        %v649 = vmul.f32 %v647, %v648
        %v650 = vsub.f32 1.0, %v649
        %v651 = vmul.f32 %v648, %v650
        %v652 = vadd.f32 %v648, %v651
        %vm653 = vweird.f32 %v647
        %vm654 = vweird.f32 %v648
        %vm655 = vmor %vm653, %vm654
        %v656 = vsel %vm655, %v648, %v652
        %v657 = vand.u32 2147483647, %v647
        %vm658 = vcmp.eq.f32.partialorder %v657, 8.507059e+37
        %v659 = vand.u32 %v647, 2147483648
        %v660 = vor.u32 1.1754944e-38, %v659
        %v661 = vsel %vm658, %v660, %v656
        %v662 = vmul.f32 %v637, %v661
        %v663 = vmin.f32 %v662, 1.0
        %v664 = vmax.f32 %v663, -1.0
        %v665 = vmul.f32 %v454, %v454
        %v666 = vmin.f32 16.0, %v665
        %v667 = vmul.f32 %v666, 2.1237322e-06
        %v668 = vadd.f32 %v667, 0.00028619796
        %v669 = vmul.f32 %v666, %v668
        %v670 = vadd.f32 %v669, 0.0036580483
        %v671 = vmul.f32 %v666, %v670
        %v672 = vadd.f32 %v671, 0.05243302
        %v673 = vmul.f32 %v666, %v672
        %v674 = vadd.f32 %v673, 0.18741608
        %v675 = vmul.f32 %v666, %v674
        %v676 = vadd.f32 %v675, 1.1283791
        %v677 = vmul.f32 %v454, %v676
        %v678 = vmul.f32 %v666, 3.8918573e-05
        %v679 = vadd.f32 %v678, 0.001143296
        %v680 = vmul.f32 %v666, %v679
        %v681 = vadd.f32 %v680, 0.014752088
        %v682 = vmul.f32 %v666, %v681
        %v683 = vadd.f32 %v682, 0.112945676
        %v684 = vmul.f32 %v666, %v683
        %v685 = vadd.f32 %v684, 0.4994258
        %v686 = vmul.f32 %v666, %v685
        %v687 = vadd.f32 %v686, 1.0
        %v688 = vrcp.pop %v687
        %v689 = vmul.f32 %v687, %v688
        %v690 = vsub.f32 1.0, %v689
        %v691 = vmul.f32 %v688, %v690
        %v692 = vadd.f32 %v688, %v691
        %vm693 = vweird.f32 %v687
        %vm694 = vweird.f32 %v688
        %vm695 = vmor %vm693, %vm694
        %v696 = vsel %vm695, %v688, %v692
        %v697 = vand.u32 2147483647, %v687
        %vm698 = vcmp.eq.f32.partialorder %v697, 8.507059e+37
        %v699 = vand.u32 %v687, 2147483648
        %v700 = vor.u32 1.1754944e-38, %v699
        %v701 = vsel %vm698, %v700, %v696
        %v702 = vmul.f32 %v677, %v701
        %v703 = vmin.f32 %v702, 1.0
        %v704 = vmax.f32 %v703, -1.0
        %v705 = vmul.f32 %v455, %v455
        %v706 = vmin.f32 16.0, %v705
        %v707 = vmul.f32 %v706, 2.1237322e-06
        %v708 = vadd.f32 %v707, 0.00028619796
        %v709 = vmul.f32 %v706, %v708
        %v710 = vadd.f32 %v709, 0.0036580483
        %v711 = vmul.f32 %v706, %v710
        %v712 = vadd.f32 %v711, 0.05243302
        %v713 = vmul.f32 %v706, %v712
        %v714 = vadd.f32 %v713, 0.18741608
        %v715 = vmul.f32 %v706, %v714
        %v716 = vadd.f32 %v715, 1.1283791
        %v717 = vmul.f32 %v455, %v716
        %v718 = vmul.f32 %v706, 3.8918573e-05
        %v719 = vadd.f32 %v718, 0.001143296
        %v720 = vmul.f32 %v706, %v719
        %v721 = vadd.f32 %v720, 0.014752088
        %v722 = vmul.f32 %v706, %v721
        %v723 = vadd.f32 %v722, 0.112945676
        %v724 = vmul.f32 %v706, %v723
        %v725 = vadd.f32 %v724, 0.4994258
        %v726 = vmul.f32 %v706, %v725
        %v727 = vadd.f32 %v726, 1.0
        %v728 = vrcp.pop %v727
        %v729 = vmul.f32 %v727, %v728
        %v730 = vsub.f32 1.0, %v729
        %v731 = vmul.f32 %v728, %v730
        %v732 = vadd.f32 %v728, %v731
        %vm733 = vweird.f32 %v727
        %vm734 = vweird.f32 %v728
        %vm735 = vmor %vm733, %vm734
        %v736 = vsel %vm735, %v728, %v732
        %v737 = vand.u32 2147483647, %v727
        %vm738 = vcmp.eq.f32.partialorder %v737, 8.507059e+37
        %v739 = vand.u32 %v727, 2147483648
        %v740 = vor.u32 1.1754944e-38, %v739
        %v741 = vsel %vm738, %v740, %v736
        %v742 = vmul.f32 %v717, %v741
        %v743 = vmin.f32 %v742, 1.0
        %v744 = vmax.f32 %v743, -1.0
        %v745 = vmul.f32 %v456, %v456
        %v746 = vmin.f32 16.0, %v745
        %v747 = vmul.f32 %v746, 2.1237322e-06
        %v748 = vadd.f32 %v747, 0.00028619796
        %v749 = vmul.f32 %v746, %v748
        %v750 = vadd.f32 %v749, 0.0036580483
        %v751 = vmul.f32 %v746, %v750
        %v752 = vadd.f32 %v751, 0.05243302
        %v753 = vmul.f32 %v746, %v752
        %v754 = vadd.f32 %v753, 0.18741608
        %v755 = vmul.f32 %v746, %v754
        %v756 = vadd.f32 %v755, 1.1283791
        %v757 = vmul.f32 %v456, %v756
        %v758 = vmul.f32 %v746, 3.8918573e-05
        %v759 = vadd.f32 %v758, 0.001143296
        %v760 = vmul.f32 %v746, %v759
        %v761 = vadd.f32 %v760, 0.014752088
        %v762 = vmul.f32 %v746, %v761
        %v763 = vadd.f32 %v762, 0.112945676
        %v764 = vmul.f32 %v746, %v763
        %v765 = vadd.f32 %v764, 0.4994258
        %v766 = vmul.f32 %v746, %v765
        %v767 = vadd.f32 %v766, 1.0
        %v768 = vrcp.pop %v767
        %v769 = vmul.f32 %v767, %v768
        %v770 = vsub.f32 1.0, %v769
        %v771 = vmul.f32 %v768, %v770
        %v772 = vadd.f32 %v768, %v771
        %vm773 = vweird.f32 %v767
        %vm774 = vweird.f32 %v768
        %vm775 = vmor %vm773, %vm774
        %v776 = vsel %vm775, %v768, %v772
        %v777 = vand.u32 2147483647, %v767
        %vm778 = vcmp.eq.f32.partialorder %v777, 8.507059e+37
        %v779 = vand.u32 %v767, 2147483648
        %v780 = vor.u32 1.1754944e-38, %v779
        %v781 = vsel %vm778, %v780, %v776
        %v782 = vmul.f32 %v757, %v781
        %v783 = vmin.f32 %v782, 1.0
        %v784 = vmax.f32 %v783, -1.0
        %v785 = vmul.f32 %v457, %v457
        %v786 = vmin.f32 16.0, %v785
        %v787 = vmul.f32 %v786, 2.1237322e-06
        %v788 = vadd.f32 %v787, 0.00028619796
        %v789 = vmul.f32 %v786, %v788
        %v790 = vadd.f32 %v789, 0.0036580483
        %v791 = vmul.f32 %v786, %v790
        %v792 = vadd.f32 %v791, 0.05243302
        %v793 = vmul.f32 %v786, %v792
        %v794 = vadd.f32 %v793, 0.18741608
        %v795 = vmul.f32 %v786, %v794
        %v796 = vadd.f32 %v795, 1.1283791
        %v797 = vmul.f32 %v457, %v796
        %v798 = vmul.f32 %v786, 3.8918573e-05
        %v799 = vadd.f32 %v798, 0.001143296
        %v800 = vmul.f32 %v786, %v799
        %v801 = vadd.f32 %v800, 0.014752088
        %v802 = vmul.f32 %v786, %v801
        %v803 = vadd.f32 %v802, 0.112945676
        %v804 = vmul.f32 %v786, %v803
        %v805 = vadd.f32 %v804, 0.4994258
        %v806 = vmul.f32 %v786, %v805
        %v807 = vadd.f32 %v806, 1.0
        %v808 = vrcp.pop %v807
        %v809 = vmul.f32 %v807, %v808
        %v810 = vsub.f32 1.0, %v809
        %v811 = vmul.f32 %v808, %v810
        %v812 = vadd.f32 %v808, %v811
        %vm813 = vweird.f32 %v807
        %vm814 = vweird.f32 %v808
        %vm815 = vmor %vm813, %vm814
        %v816 = vsel %vm815, %v808, %v812
        %v817 = vand.u32 2147483647, %v807
        %vm818 = vcmp.eq.f32.partialorder %v817, 8.507059e+37
        %v819 = vand.u32 %v807, 2147483648
        %v820 = vor.u32 1.1754944e-38, %v819
        %v821 = vsel %vm818, %v820, %v816
        %v822 = vmul.f32 %v797, %v821
        %v823 = vmin.f32 %v822, 1.0
        %v824 = vmax.f32 %v823, -1.0
        %v825 = vmul.f32 %v458, %v458
        %v826 = vmin.f32 16.0, %v825
        %v827 = vmul.f32 %v826, 2.1237322e-06
        %v828 = vadd.f32 %v827, 0.00028619796
        %v829 = vmul.f32 %v826, %v828
        %v830 = vadd.f32 %v829, 0.0036580483
        %v831 = vmul.f32 %v826, %v830
        %v832 = vadd.f32 %v831, 0.05243302
        %v833 = vmul.f32 %v826, %v832
        %v834 = vadd.f32 %v833, 0.18741608
        %v835 = vmul.f32 %v826, %v834
        %v836 = vadd.f32 %v835, 1.1283791
        %v837 = vmul.f32 %v458, %v836
        %v838 = vmul.f32 %v826, 3.8918573e-05
        %v839 = vadd.f32 %v838, 0.001143296
        %v840 = vmul.f32 %v826, %v839
        %v841 = vadd.f32 %v840, 0.014752088
        %v842 = vmul.f32 %v826, %v841
        %v843 = vadd.f32 %v842, 0.112945676
        %v844 = vmul.f32 %v826, %v843
        %v845 = vadd.f32 %v844, 0.4994258
        %v846 = vmul.f32 %v826, %v845
        %v847 = vadd.f32 %v846, 1.0
        %v848 = vrcp.pop %v847
        %v849 = vmul.f32 %v847, %v848
        %v850 = vsub.f32 1.0, %v849
        %v851 = vmul.f32 %v848, %v850
        %v852 = vadd.f32 %v848, %v851
        %vm853 = vweird.f32 %v847
        %vm854 = vweird.f32 %v848
        %vm855 = vmor %vm853, %vm854
        %v856 = vsel %vm855, %v848, %v852
        %v857 = vand.u32 2147483647, %v847
        %vm858 = vcmp.eq.f32.partialorder %v857, 8.507059e+37
        %v859 = vand.u32 %v847, 2147483648
        %v860 = vor.u32 1.1754944e-38, %v859
        %v861 = vsel %vm858, %v860, %v856
        %v862 = vmul.f32 %v837, %v861
        %v863 = vmin.f32 %v862, 1.0
        %v864 = vmax.f32 %v863, -1.0
        %v865 = vmul.f32 %v459, %v459
        %v866 = vmin.f32 16.0, %v865
        %v867 = vmul.f32 %v866, 2.1237322e-06
        %v868 = vadd.f32 %v867, 0.00028619796
        %v869 = vmul.f32 %v866, %v868
        %v870 = vadd.f32 %v869, 0.0036580483
        %v871 = vmul.f32 %v866, %v870
        %v872 = vadd.f32 %v871, 0.05243302
        %v873 = vmul.f32 %v866, %v872
        %v874 = vadd.f32 %v873, 0.18741608
        %v875 = vmul.f32 %v866, %v874
        %v876 = vadd.f32 %v875, 1.1283791
        %v877 = vmul.f32 %v459, %v876
        %v878 = vmul.f32 %v866, 3.8918573e-05
        %v879 = vadd.f32 %v878, 0.001143296
        %v880 = vmul.f32 %v866, %v879
        %v881 = vadd.f32 %v880, 0.014752088
        %v882 = vmul.f32 %v866, %v881
        %v883 = vadd.f32 %v882, 0.112945676
        %v884 = vmul.f32 %v866, %v883
        %v885 = vadd.f32 %v884, 0.4994258
        %v886 = vmul.f32 %v866, %v885
        %v887 = vadd.f32 %v886, 1.0
        %v888 = vrcp.pop %v887
        %v889 = vmul.f32 %v887, %v888
        %v890 = vsub.f32 1.0, %v889
        %v891 = vmul.f32 %v888, %v890
        %v892 = vadd.f32 %v888, %v891
        %vm893 = vweird.f32 %v887
        %vm894 = vweird.f32 %v888
        %vm895 = vmor %vm893, %vm894
        %v896 = vsel %vm895, %v888, %v892
        %v897 = vand.u32 2147483647, %v887
        %vm898 = vcmp.eq.f32.partialorder %v897, 8.507059e+37
        %v899 = vand.u32 %v887, 2147483648
        %v900 = vor.u32 1.1754944e-38, %v899
        %v901 = vsel %vm898, %v900, %v896
        %v902 = vmul.f32 %v877, %v901
        %v903 = vmin.f32 %v902, 1.0
        %v904 = vmax.f32 %v903, -1.0
        %v905 = vmul.f32 %v460, %v460
        %v906 = vmin.f32 16.0, %v905
        %v907 = vmul.f32 %v906, 2.1237322e-06
        %v908 = vadd.f32 %v907, 0.00028619796
        %v909 = vmul.f32 %v906, %v908
        %v910 = vadd.f32 %v909, 0.0036580483
        %v911 = vmul.f32 %v906, %v910
        %v912 = vadd.f32 %v911, 0.05243302
        %v913 = vmul.f32 %v906, %v912
        %v914 = vadd.f32 %v913, 0.18741608
        %v915 = vmul.f32 %v906, %v914
        %v916 = vadd.f32 %v915, 1.1283791
        %v917 = vmul.f32 %v460, %v916
        %v918 = vmul.f32 %v906, 3.8918573e-05
        %v919 = vadd.f32 %v918, 0.001143296
        %v920 = vmul.f32 %v906, %v919
        %v921 = vadd.f32 %v920, 0.014752088
        %v922 = vmul.f32 %v906, %v921
        %v923 = vadd.f32 %v922, 0.112945676
        %v924 = vmul.f32 %v906, %v923
        %v925 = vadd.f32 %v924, 0.4994258
        %v926 = vmul.f32 %v906, %v925
        %v927 = vadd.f32 %v926, 1.0
        %v928 = vrcp.pop %v927
        %v929 = vmul.f32 %v927, %v928
        %v930 = vsub.f32 1.0, %v929
        %v931 = vmul.f32 %v928, %v930
        %v932 = vadd.f32 %v928, %v931
        %vm933 = vweird.f32 %v927
        %vm934 = vweird.f32 %v928
        %vm935 = vmor %vm933, %vm934
        %v936 = vsel %vm935, %v928, %v932
        %v937 = vand.u32 2147483647, %v927
        %vm938 = vcmp.eq.f32.partialorder %v937, 8.507059e+37
        %v939 = vand.u32 %v927, 2147483648
        %v940 = vor.u32 1.1754944e-38, %v939
        %v941 = vsel %vm938, %v940, %v936
        %v942 = vmul.f32 %v917, %v941
        %v943 = vmin.f32 %v942, 1.0
        %v944 = vmax.f32 %v943, -1.0
        %v945 = vmul.f32 %v461, %v461
        %v946 = vmin.f32 16.0, %v945
        %v947 = vmul.f32 %v946, 2.1237322e-06
        %v948 = vadd.f32 %v947, 0.00028619796
        %v949 = vmul.f32 %v946, %v948
        %v950 = vadd.f32 %v949, 0.0036580483
        %v951 = vmul.f32 %v946, %v950
        %v952 = vadd.f32 %v951, 0.05243302
        %v953 = vmul.f32 %v946, %v952
        %v954 = vadd.f32 %v953, 0.18741608
        %v955 = vmul.f32 %v946, %v954
        %v956 = vadd.f32 %v955, 1.1283791
        %v957 = vmul.f32 %v461, %v956
        %v958 = vmul.f32 %v946, 3.8918573e-05
        %v959 = vadd.f32 %v958, 0.001143296
        %v960 = vmul.f32 %v946, %v959
        %v961 = vadd.f32 %v960, 0.014752088
        %v962 = vmul.f32 %v946, %v961
        %v963 = vadd.f32 %v962, 0.112945676
        %v964 = vmul.f32 %v946, %v963
        %v965 = vadd.f32 %v964, 0.4994258
        %v966 = vmul.f32 %v946, %v965
        %v967 = vadd.f32 %v966, 1.0
        %v968 = vrcp.pop %v967
        %v969 = vmul.f32 %v967, %v968
        %v970 = vsub.f32 1.0, %v969
        %v971 = vmul.f32 %v968, %v970
        %v972 = vadd.f32 %v968, %v971
        %vm973 = vweird.f32 %v967
        %vm974 = vweird.f32 %v968
        %vm975 = vmor %vm973, %vm974
        %v976 = vsel %vm975, %v968, %v972
        %v977 = vand.u32 2147483647, %v967
        %vm978 = vcmp.eq.f32.partialorder %v977, 8.507059e+37
        %v979 = vand.u32 %v967, 2147483648
        %v980 = vor.u32 1.1754944e-38, %v979
        %v981 = vsel %vm978, %v980, %v976
        %v982 = vmul.f32 %v957, %v981
        %v983 = vmin.f32 %v982, 1.0
        %v984 = vmax.f32 %v983, -1.0
        %v985 = vmul.f32 %v462, %v462
        %v986 = vmin.f32 16.0, %v985
        %v987 = vmul.f32 %v986, 2.1237322e-06
        %v988 = vadd.f32 %v987, 0.00028619796
        %v989 = vmul.f32 %v986, %v988
        %v990 = vadd.f32 %v989, 0.0036580483
        %v991 = vmul.f32 %v986, %v990
        %v992 = vadd.f32 %v991, 0.05243302
        %v993 = vmul.f32 %v986, %v992
        %v994 = vadd.f32 %v993, 0.18741608
        %v995 = vmul.f32 %v986, %v994
        %v996 = vadd.f32 %v995, 1.1283791
        %v997 = vmul.f32 %v462, %v996
        %v998 = vmul.f32 %v986, 3.8918573e-05
        %v999 = vadd.f32 %v998, 0.001143296
        %v1000 = vmul.f32 %v986, %v999
        %v1001 = vadd.f32 %v1000, 0.014752088
        %v1002 = vmul.f32 %v986, %v1001
        %v1003 = vadd.f32 %v1002, 0.112945676
        %v1004 = vmul.f32 %v986, %v1003
        %v1005 = vadd.f32 %v1004, 0.4994258
        %v1006 = vmul.f32 %v986, %v1005
        %v1007 = vadd.f32 %v1006, 1.0
        %v1008 = vrcp.pop %v1007
        %v1009 = vmul.f32 %v1007, %v1008
        %v1010 = vsub.f32 1.0, %v1009
        %v1011 = vmul.f32 %v1008, %v1010
        %v1012 = vadd.f32 %v1008, %v1011
        %vm1013 = vweird.f32 %v1007
        %vm1014 = vweird.f32 %v1008
        %vm1015 = vmor %vm1013, %vm1014
        %v1016 = vsel %vm1015, %v1008, %v1012
        %v1017 = vand.u32 2147483647, %v1007
        %vm1018 = vcmp.eq.f32.partialorder %v1017, 8.507059e+37
        %v1019 = vand.u32 %v1007, 2147483648
        %v1020 = vor.u32 1.1754944e-38, %v1019
        %v1021 = vsel %vm1018, %v1020, %v1016
        %v1022 = vmul.f32 %v997, %v1021
        %v1023 = vmin.f32 %v1022, 1.0
        %v1024 = vmax.f32 %v1023, -1.0
        %v1025 = vmul.f32 %v463, %v463
        %v1026 = vmin.f32 16.0, %v1025
        %v1027 = vmul.f32 %v1026, 2.1237322e-06
        %v1028 = vadd.f32 %v1027, 0.00028619796
        %v1029 = vmul.f32 %v1026, %v1028
        %v1030 = vadd.f32 %v1029, 0.0036580483
        %v1031 = vmul.f32 %v1026, %v1030
        %v1032 = vadd.f32 %v1031, 0.05243302
        %v1033 = vmul.f32 %v1026, %v1032
        %v1034 = vadd.f32 %v1033, 0.18741608
        %v1035 = vmul.f32 %v1026, %v1034
        %v1036 = vadd.f32 %v1035, 1.1283791
        %v1037 = vmul.f32 %v463, %v1036
        %v1038 = vmul.f32 %v1026, 3.8918573e-05
        %v1039 = vadd.f32 %v1038, 0.001143296
        %v1040 = vmul.f32 %v1026, %v1039
        %v1041 = vadd.f32 %v1040, 0.014752088
        %v1042 = vmul.f32 %v1026, %v1041
        %v1043 = vadd.f32 %v1042, 0.112945676
        %v1044 = vmul.f32 %v1026, %v1043
        %v1045 = vadd.f32 %v1044, 0.4994258
        %v1046 = vmul.f32 %v1026, %v1045
        %v1047 = vadd.f32 %v1046, 1.0
        %v1048 = vrcp.pop %v1047
        %v1049 = vmul.f32 %v1047, %v1048
        %v1050 = vsub.f32 1.0, %v1049
        %v1051 = vmul.f32 %v1048, %v1050
        %v1052 = vadd.f32 %v1048, %v1051
        %vm1053 = vweird.f32 %v1047
        %vm1054 = vweird.f32 %v1048
        %vm1055 = vmor %vm1053, %vm1054
        %v1056 = vsel %vm1055, %v1048, %v1052
        %v1057 = vand.u32 2147483647, %v1047
        %vm1058 = vcmp.eq.f32.partialorder %v1057, 8.507059e+37
        %v1059 = vand.u32 %v1047, 2147483648
        %v1060 = vor.u32 1.1754944e-38, %v1059
        %v1061 = vsel %vm1058, %v1060, %v1056
        %v1062 = vmul.f32 %v1037, %v1061
        %v1063 = vmin.f32 %v1062, 1.0
        %v1064 = vmax.f32 %v1063, -1.0
        %v1065 = vmul.f32 %v464, %v464
        %v1066 = vmin.f32 16.0, %v1065
        %v1067 = vmul.f32 %v1066, 2.1237322e-06
        %v1068 = vadd.f32 %v1067, 0.00028619796
        %v1069 = vmul.f32 %v1066, %v1068
        %v1070 = vadd.f32 %v1069, 0.0036580483
        %v1071 = vmul.f32 %v1066, %v1070
        %v1072 = vadd.f32 %v1071, 0.05243302
        %v1073 = vmul.f32 %v1066, %v1072
        %v1074 = vadd.f32 %v1073, 0.18741608
        %v1075 = vmul.f32 %v1066, %v1074
        %v1076 = vadd.f32 %v1075, 1.1283791
        %v1077 = vmul.f32 %v464, %v1076
        %v1078 = vmul.f32 %v1066, 3.8918573e-05
        %v1079 = vadd.f32 %v1078, 0.001143296
        %v1080 = vmul.f32 %v1066, %v1079
        %v1081 = vadd.f32 %v1080, 0.014752088
        %v1082 = vmul.f32 %v1066, %v1081
        %v1083 = vadd.f32 %v1082, 0.112945676
        %v1084 = vmul.f32 %v1066, %v1083
        %v1085 = vadd.f32 %v1084, 0.4994258
        %v1086 = vmul.f32 %v1066, %v1085
        %v1087 = vadd.f32 %v1086, 1.0
        %v1088 = vrcp.pop %v1087
        %v1089 = vmul.f32 %v1087, %v1088
        %v1090 = vsub.f32 1.0, %v1089
        %v1091 = vmul.f32 %v1088, %v1090
        %v1092 = vadd.f32 %v1088, %v1091
        %vm1093 = vweird.f32 %v1087
        %vm1094 = vweird.f32 %v1088
        %vm1095 = vmor %vm1093, %vm1094
        %v1096 = vsel %vm1095, %v1088, %v1092
        %v1097 = vand.u32 2147483647, %v1087
        %vm1098 = vcmp.eq.f32.partialorder %v1097, 8.507059e+37
        %v1099 = vand.u32 %v1087, 2147483648
        %v1100 = vor.u32 1.1754944e-38, %v1099
        %v1101 = vsel %vm1098, %v1100, %v1096
        %v1102 = vmul.f32 %v1077, %v1101
        %v1103 = vmin.f32 %v1102, 1.0
        %v1104 = vmax.f32 %v1103, -1.0
        %v1105 = vadd.f32 %v504, 1.0
        %v1106 = vadd.f32 %v544, 1.0
        %v1107 = vadd.f32 %v584, 1.0
        %v1108 = vadd.f32 %v624, 1.0
        %v1109 = vadd.f32 %v664, 1.0
        %v1110 = vadd.f32 %v704, 1.0
        %v1111 = vadd.f32 %v744, 1.0
        %v1112 = vadd.f32 %v784, 1.0
        %v1113 = vadd.f32 %v824, 1.0
        %v1114 = vadd.f32 %v864, 1.0
        %v1115 = vadd.f32 %v904, 1.0
        %v1116 = vadd.f32 %v944, 1.0
        %v1117 = vadd.f32 %v984, 1.0
        %v1118 = vadd.f32 %v1024, 1.0
        %v1119 = vadd.f32 %v1064, 1.0
        %v1120 = vadd.f32 %v1104, 1.0
        %v1121 = vmul.f32 %v433, %v1105
        %v1122 = vmul.f32 %v434, %v1106
        %v1123 = vmul.f32 %v435, %v1107
        %v1124 = vmul.f32 %v436, %v1108
        %v1125 = vmul.f32 %v437, %v1109
        %v1126 = vmul.f32 %v438, %v1110
        %v1127 = vmul.f32 %v439, %v1111
        %v1128 = vmul.f32 %v440, %v1112
        %v1129 = vmul.f32 %v441, %v1113
        %v1130 = vmul.f32 %v442, %v1114
        %v1131 = vmul.f32 %v443, %v1115
        %v1132 = vmul.f32 %v444, %v1116
        %v1133 = vmul.f32 %v445, %v1117
        %v1134 = vmul.f32 %v446, %v1118
        %v1135 = vmul.f32 %v447, %v1119
        %v1136 = vmul.f32 %v448, %v1120
        %1138 = vset.pattern.permute.xlu0 0
        %1139 = vperm.xlu0 %1138, %v274
        %v1140 = vpop.permute.xlu0 %1139
        %1143 = vset.pattern.permute.xlu0 0
        %1144 = vperm.xlu0 %1143, %v275
        %v1145 = vpop.permute.xlu0 %1144
        %1148 = vset.pattern.permute.xlu0 0
        %1149 = vperm.xlu0 %1148, %v276
        %v1150 = vpop.permute.xlu0 %1149
        %1153 = vset.pattern.permute.xlu0 0
        %1154 = vperm.xlu0 %1153, %v277
        %v1155 = vpop.permute.xlu0 %1154
        %vm1157 = vcmask 523264
        %v1159 = vsel %vm1157, %v262, 0
        %v1162 = vsel %vm1157, %v263, 0
        %v1165 = vsel %vm1157, %v264, 0
        %v1168 = vsel %vm1157, %v265, 0
        %1170 = vmatpush.msra.mxu0 0.0
        %1171 = vmatpush.msra.mxu0 0.0
        %1172 = vmatpush.msra.mxu0 0.0
        %1173 = vmatpush.msra.mxu0 0.0
        %1174 = vmatpush.msra.mxu0 0.0
        %1175 = vmatpush.msra.mxu0 0.0
        %1176 = vmatpush.msra.mxu0 0.0
        %1177 = vmatpush.msra.mxu0 0.0
        %1178 = vmatpush.msra.mxu0 %v1135
        %1179 = vmatpush.msra.mxu0 %v1133
        %1180 = vmatpush.msra.mxu0 %v1131
        %1181 = vmatpush.msra.mxu0 %v1129
        %1182 = vmatpush.msra.mxu0 %v1127
        %1183 = vmatpush.msra.mxu0 %v1125
        %1184 = vmatpush.msra.mxu0 %v1123
        %1185 = vmatpush.msra.mxu0 %v1121
        %1186 = vmatmul.f32.gmra.mxu0 %v1159
        %v1187 = vpop.f32.mrf.mxu0
        %v1188 = vadd.f32 %v1140, %v1187
        %1189 = vmatmul.f32.gmra.mxu0 %v1162
        %v1190 = vpop.f32.mrf.mxu0
        %v1191 = vadd.f32 %v1145, %v1190
        %1192 = vmatmul.f32.gmra.mxu0 %v1165
        %v1193 = vpop.f32.mrf.mxu0
        %v1194 = vadd.f32 %v1150, %v1193
        %1195 = vmatmul.f32.gmra.mxu0 %v1168
        %v1196 = vpop.f32.mrf.mxu0
        %v1197 = vadd.f32 %v1155, %v1196
        %1198 = vdwg.mxu0
        %1199 = vmatpush.msra.mxu0 0.0
        %1200 = vmatpush.msra.mxu0 0.0
        %1201 = vmatpush.msra.mxu0 0.0
        %1202 = vmatpush.msra.mxu0 0.0
        %1203 = vmatpush.msra.mxu0 0.0
        %1204 = vmatpush.msra.mxu0 0.0
        %1205 = vmatpush.msra.mxu0 0.0
        %1206 = vmatpush.msra.mxu0 0.0
        %1207 = vmatpush.msra.mxu0 %v1136
        %1208 = vmatpush.msra.mxu0 %v1134
        %1209 = vmatpush.msra.mxu0 %v1132
        %1210 = vmatpush.msra.mxu0 %v1130
        %1211 = vmatpush.msra.mxu0 %v1128
        %1212 = vmatpush.msra.mxu0 %v1126
        %1213 = vmatpush.msra.mxu0 %v1124
        %1214 = vmatpush.msra.mxu0 %v1122
        %1215 = vmatmul.f32.gmra.mxu0 %v1159
        %v1216 = vpop.f32.mrf.mxu0
        %v1217 = vadd.f32 %v1140, %v1216
        %1218 = vmatmul.f32.gmra.mxu0 %v1162
        %v1219 = vpop.f32.mrf.mxu0
        %v1220 = vadd.f32 %v1145, %v1219
        %1221 = vmatmul.f32.gmra.mxu0 %v1165
        %v1222 = vpop.f32.mrf.mxu0
        %v1223 = vadd.f32 %v1150, %v1222
        %1224 = vmatmul.f32.gmra.mxu0 %v1168
        %v1225 = vpop.f32.mrf.mxu0
        %v1226 = vadd.f32 %v1155, %v1225
        %1227 = vdwg.mxu0
        %1228 = vst [vmem:[%s242] sm:$0xff] %v1188
        %1229 = vst [vmem:[%s242 + $0x8] sm:$0xff] %v1217
        %1230 = vst [vmem:[%s242 + $0x10] sm:$0xff] %v1191
        %1231 = vst [vmem:[%s242 + $0x18] sm:$0xff] %v1220
        %1232 = vst [vmem:[%s242 + $0x20] sm:$0xff] %v1194
        %1233 = vst [vmem:[%s242 + $0x28] sm:$0xff] %v1223
        %1234 = vst [vmem:[%s242 + $0x30] sm:$0xff] %v1197
        %1235 = vst [vmem:[%s242 + $0x38] sm:$0xff] %v1226
        %s1236 = sand.u32 %s153, 1
        %s1237 = scalar_lea.sflag [#allocation3], %s1236
        %s1238 = sand.u32 %s153, 1
        %s1239 = smul.addr %s1238, 64
        %s1240 = scalar_lea.vmem [#allocation2], %s1239
        // Predicated region
        $region41: #{tpu_custom_call.1} parent=39 // pred_check
          %p1241 = pneg %p163
        $region42: #{tpu_custom_call.1} parent=39 // pred_check_branch
          %1243 = sbr.rel (%p1241) target = $region44
        $region43: #{tpu_custom_call.1} parent=39 // pred_region
          %s1244 = smul.u32 2, %s24
          %1246 = vsyncadd %s1237, 0
          %s1247 = smul.addr %s23, 8
          %s1248 = sadd.s32 %s1244, %s1247
          %s1249 = smul.addr %s1248, 8
          %s1250 = scalar_lea.hbm %s5, %s1249
          %s1251 = sshll.u32 %s1240, 4
          %s1252 = int_to_ptr.vmem [resolvable:$true] %s1251
          %s1253 = sshll.u32 %s1250, 4
          %s1254 = int_to_ptr.hbm [resolvable:$true] %s1253
          %1259 = dma.vmem_to_hbm [thread:$0]  %s1252, 1024, %s1254, %s1237, 256, 256, 16
        $region44: #{tpu_custom_call.1} parent=39 // pred_fallthru
          _
      $region40: #{tpu_custom_call.1} parent=5 // pred_fallthru
        _
      %p1260 = scmp.le.s32.totalorder 2, %s14
      // Predicated region
      $region45: #{tpu_custom_call.1} parent=5 // pred_check
        %p1261 = pneg %p1260
      $region46: #{tpu_custom_call.1} parent=5 // pred_check_branch
        %1263 = sbr.rel (%p1261) target = $region48
      $region47: #{tpu_custom_call.1} parent=5 // pred_region
        %s1264 = ssub.s32 %s14, 2
        // Predicated region
        $region49: #{tpu_custom_call.1} parent=47 // pred_check
          %p1265 = pneg %p169
        $region50: #{tpu_custom_call.1} parent=47 // pred_check_branch
          %1267 = sbr.rel (%p1265) target = $region52
        $region51: #{tpu_custom_call.1} parent=47 // pred_region
          %s1268 = sand.u32 %s154, 1
          %s1269 = scalar_lea.sflag [#allocation3], %s1268
          %s1270 = sand.u32 %s154, 1
          %s1271 = smul.addr %s1270, 64
          %s1272 = scalar_lea.vmem [#allocation2], %s1271
          %1274 = dma.done %s1269, 1024
        $region52: #{tpu_custom_call.1} parent=47 // pred_fallthru
          _
      $region48: #{tpu_custom_call.1} parent=5 // pred_fallthru
        _
    $region6: #{tpu_custom_call.1} parent=1 // loop_footer
      %s18 = sadd.s32 1, %s14
    $region7: #{tpu_custom_call.1} parent=1 // loop_footer_branch
      %13 = sbr.rel target = $region3
    $region8: #{tpu_custom_call.1} parent=1 // loop_exit
      _
    %1275 = vsyncpa [#allocation3], 1
    %s1276 = scalar_lea.sflag [#allocation3], 1
    %1277 = vsyncpa %s1276, 1

</llo_original>
